<compile_context>
chip_gen: v7x
topology: tpu7x:2x2x1
jax: 0.10.0
libtpu: 0.0.40
codegen_flags: <defaults>
</compile_context>

<pallas_src>
import functools

import jax
import jax.numpy as jnp
from jax.experimental import pallas as pl
from jax.experimental.pallas import tpu as pltpu


def _round_up(n, m):
    return ((n + m - 1) // m) * m


def _padded_bytes(shape, itemsize):
    """Rough VMEM footprint of one buffer, padded to (8, 128) tiles."""
    s = list(shape)
    s[-1] = _round_up(s[-1], 128)
    if len(s) >= 2:
        s[-2] = _round_up(s[-2], 8)
    total = itemsize
    for d in s:
        total *= d
    return total


def _piecewise_encoder_kernel(x_ref, w1_ref, gamma_ref, beta_ref,
                              wh_ref, bh_ref, mu_ref, lv_ref,
                              sum_ref, sumsq_ref, scale_ref, shift_ref,
                              *, n_rows, tm, zdim, mxu_dtype):
    """Grid = (phase, n_tile).  phase 0: BN stats; phase 1: BN + act + heads."""
    phase = pl.program_id(0)
    i = pl.program_id(1)

    # Shared by both phases: h = x_tile @ W1 (MXU, f32 accumulation).
    # The Linear bias b1 is omitted: training-mode BN subtracts the batch
    # mean, which cancels any constant per-feature bias exactly.
    h = jnp.dot(x_ref[...].astype(mxu_dtype), w1_ref[...],
                preferred_element_type=jnp.float32)

    @pl.when(phase == 0)
    def _accumulate_stats():
        @pl.when(i == 0)
        def _init():
            sum_ref[...] = jnp.zeros_like(sum_ref)
            sumsq_ref[...] = jnp.zeros_like(sumsq_ref)

        if n_rows % tm != 0:
            # Last tile overhangs the batch: mask out-of-bounds rows so the
            # statistics only see real data (select, so garbage can't leak).
            rows = jax.lax.broadcasted_iota(jnp.int32, (tm, 1), 0)
            hm = jnp.where(rows < n_rows - i * tm, h, 0.0)
        else:
            hm = h
        sum_ref[...] += jnp.sum(hm, axis=0, keepdims=True)
        sumsq_ref[...] += jnp.sum(hm * hm, axis=0, keepdims=True)

    @pl.when(phase == 1)
    def _apply():
        @pl.when(i == 0)
        def _fold_bn():
            # Fold BN into one per-feature scale/shift (training-mode stats).
            inv_n = 1.0 / n_rows
            mean = sum_ref[...] * inv_n
            var = jnp.maximum(sumsq_ref[...] * inv_n - mean * mean, 0.0)
            scale = gamma_ref[...] * jax.lax.rsqrt(var + 1e-5)
            scale_ref[...] = scale
            shift_ref[...] = beta_ref[...] - mean * scale

        h_bn = h * scale_ref[...] + shift_ref[...]
        h_act = jnp.where(h_bn > 0, h_bn, 0.01 * h_bn)   # LeakyReLU(0.01)

        # Fused mu|logvar head: one MXU pass, then split into the two
        # unpadded outputs (out-of-bounds rows of a partial tile are dropped
        # by the writeback, so no masking is needed here).
        y = jnp.dot(h_act.astype(mxu_dtype), wh_ref[...],
                    preferred_element_type=jnp.float32) + bh_ref[...]
        mu_ref[...] = y[:, :zdim]
        lv_ref[...] = y[:, zdim:]


def prepare_params(w1, b1, gamma, beta, wmu, bmu, wlv, blv,
                   *, mxu_dtype=jnp.bfloat16):
    """One-time parameter preprocessing (hoisted off the per-call hot path).

    Accepts PyTorch layouts: Linear weights (out, in), biases (out,),
    BatchNorm gamma/beta (hidden,).  Fuses the mu/logvar heads, transposes
    weights to (in, out), and casts matmul weights to `mxu_dtype` once.
    b1 is dropped: training-mode BN's batch-mean subtraction cancels it.
    """
    del b1
    f32 = jnp.float32
    w1 = jnp.asarray(w1)
    wmu = jnp.asarray(wmu)
    wlv = jnp.asarray(wlv)
    zdim = int(wmu.shape[0])

    w_head = jnp.concatenate([wmu.T, wlv.T], axis=1)            # (hidden, 2*zdim)
    b_head = jnp.concatenate([jnp.asarray(bmu).reshape(-1),
                              jnp.asarray(blv).reshape(-1)]).reshape(1, -1)

    return dict(
        w1=w1.T.astype(mxu_dtype),                              # (ic, hidden)
        gamma=jnp.asarray(gamma).reshape(1, -1).astype(f32),
        beta=jnp.asarray(beta).reshape(1, -1).astype(f32),
        w_head=w_head.astype(mxu_dtype),
        b_head=b_head.astype(f32),
        zdim=zdim,
        mxu_dtype=mxu_dtype,
    )


def piecewise_encoder(x, params, *, tm_max=1024):
    """Forward pass. Returns (mu, logvar), each (N, zdim) float32."""
    n, ic = x.shape
    w1 = params["w1"]
    gamma, beta = params["gamma"], params["beta"]
    wh, bh = params["w_head"], params["b_head"]
    zdim = params["zdim"]
    mxu_dtype = params["mxu_dtype"]
    hidden = int(w1.shape[1])
    assert int(w1.shape[0]) == ic, "x feature dim does not match W1"

    # Tile over N: a single full-extent tile for small batches, otherwise
    # (8-aligned) tiles streamed through a double-buffered pipeline.
    tm = n if n <= tm_max else _round_up(tm_max, 8)
    n_tiles = -(-n // tm)
    grid = (2, n_tiles)   # (phase, n_tile); phase 0 = stats, phase 1 = apply

    # x streamed unpadded; weights / BN params are constant-index blocks
    # (DMA'd once, resident for the whole grid).
    x_spec = pl.BlockSpec((tm, ic), lambda p, i: (i, 0))
    w1_spec = pl.BlockSpec((ic, hidden), lambda p, i: (0, 0))
    wh_spec = pl.BlockSpec((hidden, 2 * zdim), lambda p, i: (0, 0))
    vec_spec = lambda d: pl.BlockSpec((1, d), lambda p, i: (0, 0))
    # Output blocks are parked on tile 0 during the stats phase (the kernel
    # never writes them there, so nothing is flushed), then walk the N tiles
    # during the apply phase.
    out_spec = pl.BlockSpec((tm, zdim), lambda p, i: (i * p, 0))

    x_bytes = x.dtype.itemsize
    w_bytes = jnp.dtype(mxu_dtype).itemsize

    # VMEM footprint estimate (double-buffered streams + resident params +
    # scratch + generous headroom for kernel temporaries).
    est = (2 * _padded_bytes((tm, ic), x_bytes)
           + 2 * _padded_bytes((ic, hidden), w_bytes)
           + 2 * _padded_bytes((hidden, 2 * zdim), w_bytes)
           + 6 * _padded_bytes((1, hidden), 4)
           + 4 * _padded_bytes((tm, zdim), 4)
           + 4 * _padded_bytes((1, hidden), 4)
           + 6 * _padded_bytes((tm, hidden), 4))
    vmem_limit = int(min(max(2 * est + (4 << 20), 32 << 20), 128 << 20))

    flops = 2 * (2 * n * ic * hidden) + 2 * n * hidden * (2 * zdim)
    bytes_accessed = (2 * n * ic * x_bytes                       # x read twice
                      + (ic * hidden + hidden * 2 * zdim) * w_bytes
                      + (2 * hidden + 2 * zdim) * 4
                      + 2 * n * zdim * 4)                        # mu + logvar

    kernel = functools.partial(_piecewise_encoder_kernel,
                               n_rows=n, tm=tm, zdim=zdim, mxu_dtype=mxu_dtype)

    mu, logvar = pl.pallas_call(
        kernel,
        out_shape=(jax.ShapeDtypeStruct((n, zdim), jnp.float32),
                   jax.ShapeDtypeStruct((n, zdim), jnp.float32)),
        grid_spec=pltpu.PrefetchScalarGridSpec(
            num_scalar_prefetch=0,
            grid=grid,
            in_specs=[x_spec, w1_spec, vec_spec(hidden), vec_spec(hidden),
                      wh_spec, vec_spec(2 * zdim)],
            out_specs=(out_spec, out_spec),
            scratch_shapes=[pltpu.VMEM((1, hidden), jnp.float32)] * 4),
        compiler_params=pltpu.CompilerParams(
            dimension_semantics=("arbitrary", "arbitrary"),
            vmem_limit_bytes=vmem_limit),
        cost_estimate=pl.CostEstimate(flops=int(flops),
                                      transcendentals=int(hidden),
                                      bytes_accessed=int(bytes_accessed)),
    )(x, w1, gamma, beta, wh, bh)
    return mu, logvar


def _reference(x, w1, b1, gamma, beta, wmu, bmu, wlv, blv,
               mxu_dtype=jnp.float32):
    """Pure-JAX reference (PyTorch layouts, training-mode BatchNorm1d)."""
    c = lambda a: a.astype(mxu_dtype)
    h = jnp.dot(c(x), c(w1.T), preferred_element_type=jnp.float32) + b1
    mean = jnp.mean(h, axis=0, keepdims=True)
    var = jnp.mean((h - mean) ** 2, axis=0, keepdims=True)
    h_bn = (h - mean) * jax.lax.rsqrt(var + 1e-5) * gamma + beta
    h_act = jnp.where(h_bn > 0, h_bn, 0.01 * h_bn)
    mu = jnp.dot(c(h_act), c(wmu.T), preferred_element_type=jnp.float32) + bmu
    lv = jnp.dot(c(h_act), c(wlv.T), preferred_element_type=jnp.float32) + blv
    return mu, lv


if __name__ == "__main__":
    # Config consistent with the module: encoder_params = {'ic':16,'hidden':32,'zdim':8}
    N, IC, HIDDEN, ZDIM = 8, 16, 32, 8

    key = jax.random.PRNGKey(0)
    ks = jax.random.split(key, 10)

    x = jax.random.normal(ks[0], (N, IC), dtype=jnp.float32)
    # PyTorch-layout parameters: Linear weight (out, in), bias (out,).
    w1 = 0.1 * jax.random.normal(ks[1], (HIDDEN, IC), dtype=jnp.float32)
    b1 = 0.1 * jax.random.normal(ks[2], (HIDDEN,), dtype=jnp.float32)
    gamma = 1.0 + 0.1 * jax.random.normal(ks[3], (HIDDEN,), dtype=jnp.float32)
    beta = 0.1 * jax.random.normal(ks[4], (HIDDEN,), dtype=jnp.float32)
    wmu = 0.1 * jax.random.normal(ks[5], (ZDIM, HIDDEN), dtype=jnp.float32)
    bmu = 0.1 * jax.random.normal(ks[6], (ZDIM,), dtype=jnp.float32)
    wlv = 0.1 * jax.random.normal(ks[7], (ZDIM, HIDDEN), dtype=jnp.float32)
    blv = 0.1 * jax.random.normal(ks[8], (ZDIM,), dtype=jnp.float32)

    # --- exact-numerics path (f32 MXU inputs, single full-batch tile) -------
    params_f32 = prepare_params(w1, b1, gamma, beta, wmu, bmu, wlv, blv,
                                mxu_dtype=jnp.float32)
    mu, logvar = piecewise_encoder(x, params_f32)
    jax.block_until_ready((mu, logvar))
    mu_ref, lv_ref = _reference(x, w1, b1, gamma, beta, wmu, bmu, wlv, blv,
                                mxu_dtype=jnp.float32)
    assert mu.shape == (N, ZDIM) and logvar.shape == (N, ZDIM)
    assert jnp.allclose(mu, mu_ref, atol=1e-4, rtol=1e-4)
    assert jnp.allclose(logvar, lv_ref, atol=1e-4, rtol=1e-4)

    # --- default bf16-MXU path (weights pre-cast once at init) --------------
    params_bf16 = prepare_params(w1, b1, gamma, beta, wmu, bmu, wlv, blv)
    mu_b, lv_b = piecewise_encoder(x, params_bf16)
    jax.block_until_ready((mu_b, lv_b))
    mu_rb, lv_rb = _reference(x, w1, b1, gamma, beta, wmu, bmu, wlv, blv,
                              mxu_dtype=jnp.bfloat16)
    assert jnp.allclose(mu_b, mu_rb, atol=1e-2, rtol=1e-2)
    assert jnp.allclose(lv_b, lv_rb, atol=1e-2, rtol=1e-2)

    # --- multi-tile + partial-tile path (N not divisible by the tile) -------
    N2 = 20
    x2 = jax.random.normal(ks[9], (N2, IC), dtype=jnp.float32)
    mu2, lv2 = piecewise_encoder(x2, params_f32, tm_max=8)
    jax.block_until_ready((mu2, lv2))
    mu2_ref, lv2_ref = _reference(x2, w1, b1, gamma, beta, wmu, bmu, wlv, blv,
                                  mxu_dtype=jnp.float32)
    assert mu2.shape == (N2, ZDIM) and lv2.shape == (N2, ZDIM)
    assert jnp.allclose(mu2, mu2_ref, atol=1e-4, rtol=1e-4)
    assert jnp.allclose(lv2, lv2_ref, atol=1e-4, rtol=1e-4)

    print("KERNEL_OK")
</pallas_src>

<mosaic_0001>
module attributes {stable_mosaic.version = 11 : i64} {
  func.func @_piecewise_encoder_kernel(%arg0: i32, %arg1: i32, %arg2: memref<8x16xf32, #tpu.memory_space<vmem>>, %arg3: memref<16x32xf32, #tpu.memory_space<vmem>>, %arg4: memref<1x32xf32, #tpu.memory_space<vmem>>, %arg5: memref<1x32xf32, #tpu.memory_space<vmem>>, %arg6: memref<32x16xf32, #tpu.memory_space<vmem>>, %arg7: memref<1x16xf32, #tpu.memory_space<vmem>>, %arg8: memref<8x8xf32, #tpu.memory_space<vmem>>, %arg9: memref<8x8xf32, #tpu.memory_space<vmem>>, %arg10: memref<1x32xf32, #tpu.memory_space<vmem>>, %arg11: memref<1x32xf32, #tpu.memory_space<vmem>>, %arg12: memref<1x32xf32, #tpu.memory_space<vmem>>, %arg13: memref<1x32xf32, #tpu.memory_space<vmem>>) attributes {dimension_semantics = [#tpu.dimension_semantics<arbitrary>, #tpu.dimension_semantics<arbitrary>], iteration_bounds = array<i64: 2, 1>, scalar_prefetch = 0 : i64, scratch_operands = 4 : i64, tpu.core_type = #tpu.core_type<tc>, window_params = [{transform_indices = @transform_0, window_bounds = array<i64: 8, 16>}, {pipeline_mode = #tpu.pipeline_mode<synchronous>, transform_indices = @transform_1, window_bounds = array<i64: 16, 32>}, {pipeline_mode = #tpu.pipeline_mode<synchronous>, transform_indices = @transform_2, window_bounds = array<i64: 1, 32>}, {pipeline_mode = #tpu.pipeline_mode<synchronous>, transform_indices = @transform_3, window_bounds = array<i64: 1, 32>}, {pipeline_mode = #tpu.pipeline_mode<synchronous>, transform_indices = @transform_4, window_bounds = array<i64: 32, 16>}, {pipeline_mode = #tpu.pipeline_mode<synchronous>, transform_indices = @transform_5, window_bounds = array<i64: 1, 16>}, {transform_indices = @transform_6, window_bounds = array<i64: 8, 8>}, {transform_indices = @transform_7, window_bounds = array<i64: 8, 8>}]} {
    %c0 = arith.constant 0 : index
    %c0_0 = arith.constant 0 : index
    %0 = vector.load %arg2[%c0, %c0_0] : memref<8x16xf32, #tpu.memory_space<vmem>>, vector<8x16xf32>
    %c0_1 = arith.constant 0 : index
    %c0_2 = arith.constant 0 : index
    %1 = vector.load %arg3[%c0_1, %c0_2] : memref<16x32xf32, #tpu.memory_space<vmem>>, vector<16x32xf32>
    %cst = arith.constant dense<0.000000e+00> : vector<8x32xf32>
    %2 = tpu.matmul %0, %1, %cst {dimension_numbers = #tpu.dot_dimension_numbers<[1], [0], [0], [1], [0, 0, 1, 1], [], []>} : vector<8x16xf32>, vector<16x32xf32>, vector<8x32xf32> -> vector<8x32xf32>
    %c0_i32 = arith.constant 0 : i32
    %3 = arith.cmpi eq, %arg0, %c0_i32 : i32
    %4 = arith.extui %3 : i1 to i32
    %c0_i32_3 = arith.constant 0 : i32
    %5 = arith.cmpi ne, %4, %c0_i32_3 : i32
    scf.if %5 {
      %c0_i32_5 = arith.constant 0 : i32
      %9 = arith.cmpi eq, %arg1, %c0_i32_5 : i32
      %10 = arith.extui %9 : i1 to i32
      %c0_i32_6 = arith.constant 0 : i32
      %11 = arith.cmpi ne, %10, %c0_i32_6 : i32
      scf.if %11 {
        %cst_17 = arith.constant 0.000000e+00 : f32
        %23 = vector.broadcast %cst_17 : f32 to vector<1x32xf32>
        %c0_18 = arith.constant 0 : index
        %c0_19 = arith.constant 0 : index
        %24 = vector.load %arg10[%c0_18, %c0_19] : memref<1x32xf32, #tpu.memory_space<vmem>>, vector<1x32xf32>
        tpu.vector_store %arg10[%c0_18, %c0_19], %23 {strides = array<i32>} : memref<1x32xf32, #tpu.memory_space<vmem>>, vector<1x32xf32>,
        %cst_20 = arith.constant 0.000000e+00 : f32
        %25 = vector.broadcast %cst_20 : f32 to vector<1x32xf32>
        %c0_21 = arith.constant 0 : index
        %c0_22 = arith.constant 0 : index
        %26 = vector.load %arg11[%c0_21, %c0_22] : memref<1x32xf32, #tpu.memory_space<vmem>>, vector<1x32xf32>
        tpu.vector_store %arg11[%c0_21, %c0_22], %25 {strides = array<i32>} : memref<1x32xf32, #tpu.memory_space<vmem>>, vector<1x32xf32>,
      } else {
      }
      %c0_7 = arith.constant 0 : index
      %c0_8 = arith.constant 0 : index
      %12 = vector.load %arg10[%c0_7, %c0_8] : memref<1x32xf32, #tpu.memory_space<vmem>>, vector<1x32xf32>
      %cst_9 = arith.constant dense<0.000000e+00> : vector<32xf32>
      %13 = vector.multi_reduction <add>, %2, %cst_9 [0] : vector<8x32xf32> to vector<32xf32>
      %14 = vector.shape_cast %13 : vector<32xf32> to vector<1x32xf32>
      %15 = arith.addf %12, %14 : vector<1x32xf32>
      %c0_10 = arith.constant 0 : index
      %c0_11 = arith.constant 0 : index
      %16 = vector.load %arg10[%c0_10, %c0_11] : memref<1x32xf32, #tpu.memory_space<vmem>>, vector<1x32xf32>
      tpu.vector_store %arg10[%c0_10, %c0_11], %15 {strides = array<i32>} : memref<1x32xf32, #tpu.memory_space<vmem>>, vector<1x32xf32>,
      %c0_12 = arith.constant 0 : index
      %c0_13 = arith.constant 0 : index
      %17 = vector.load %arg11[%c0_12, %c0_13] : memref<1x32xf32, #tpu.memory_space<vmem>>, vector<1x32xf32>
      %18 = arith.mulf %2, %2 : vector<8x32xf32>
      %cst_14 = arith.constant dense<0.000000e+00> : vector<32xf32>
      %19 = vector.multi_reduction <add>, %18, %cst_14 [0] : vector<8x32xf32> to vector<32xf32>
      %20 = vector.shape_cast %19 : vector<32xf32> to vector<1x32xf32>
      %21 = arith.addf %17, %20 : vector<1x32xf32>
      %c0_15 = arith.constant 0 : index
      %c0_16 = arith.constant 0 : index
      %22 = vector.load %arg11[%c0_15, %c0_16] : memref<1x32xf32, #tpu.memory_space<vmem>>, vector<1x32xf32>
      tpu.vector_store %arg11[%c0_15, %c0_16], %21 {strides = array<i32>} : memref<1x32xf32, #tpu.memory_space<vmem>>, vector<1x32xf32>,
    } else {
    }
    %c1_i32 = arith.constant 1 : i32
    %6 = arith.cmpi eq, %arg0, %c1_i32 : i32
    %7 = arith.extui %6 : i1 to i32
    %c0_i32_4 = arith.constant 0 : i32
    %8 = arith.cmpi ne, %7, %c0_i32_4 : i32
    scf.if %8 {
      %c0_i32_5 = arith.constant 0 : i32
      %9 = arith.cmpi eq, %arg1, %c0_i32_5 : i32
      %10 = arith.extui %9 : i1 to i32
      %c0_i32_6 = arith.constant 0 : i32
      %11 = arith.cmpi ne, %10, %c0_i32_6 : i32
      scf.if %11 {
        %c0_22 = arith.constant 0 : index
        %c0_23 = arith.constant 0 : index
        %32 = vector.load %arg10[%c0_22, %c0_23] : memref<1x32xf32, #tpu.memory_space<vmem>>, vector<1x32xf32>
        %cst_24 = arith.constant 1.250000e-01 : f32
        %33 = vector.broadcast %cst_24 : f32 to vector<1x32xf32>
        %34 = arith.mulf %32, %33 : vector<1x32xf32>
        %c0_25 = arith.constant 0 : index
        %c0_26 = arith.constant 0 : index
        %35 = vector.load %arg11[%c0_25, %c0_26] : memref<1x32xf32, #tpu.memory_space<vmem>>, vector<1x32xf32>
        %cst_27 = arith.constant 1.250000e-01 : f32
        %36 = vector.broadcast %cst_27 : f32 to vector<1x32xf32>
        %37 = arith.mulf %35, %36 : vector<1x32xf32>
        %38 = arith.mulf %34, %34 : vector<1x32xf32>
        %39 = arith.subf %37, %38 : vector<1x32xf32>
        %cst_28 = arith.constant 0.000000e+00 : f32
        %40 = vector.broadcast %cst_28 : f32 to vector<1x32xf32>
        %41 = arith.maximumf %39, %40 : vector<1x32xf32>
        %c0_29 = arith.constant 0 : index
        %c0_30 = arith.constant 0 : index
        %42 = vector.load %arg4[%c0_29, %c0_30] : memref<1x32xf32, #tpu.memory_space<vmem>>, vector<1x32xf32>
        %cst_31 = arith.constant 9.99999974E-6 : f32
        %43 = vector.broadcast %cst_31 : f32 to vector<1x32xf32>
        %44 = arith.addf %41, %43 : vector<1x32xf32>
        %45 = math.rsqrt %44 : vector<1x32xf32>
        %46 = arith.mulf %42, %45 : vector<1x32xf32>
        %c0_32 = arith.constant 0 : index
        %c0_33 = arith.constant 0 : index
        %47 = vector.load %arg12[%c0_32, %c0_33] : memref<1x32xf32, #tpu.memory_space<vmem>>, vector<1x32xf32>
        tpu.vector_store %arg12[%c0_32, %c0_33], %46 {strides = array<i32>} : memref<1x32xf32, #tpu.memory_space<vmem>>, vector<1x32xf32>,
        %c0_34 = arith.constant 0 : index
        %c0_35 = arith.constant 0 : index
        %48 = vector.load %arg5[%c0_34, %c0_35] : memref<1x32xf32, #tpu.memory_space<vmem>>, vector<1x32xf32>
        %49 = arith.mulf %34, %46 : vector<1x32xf32>
        %50 = arith.subf %48, %49 : vector<1x32xf32>
        %c0_36 = arith.constant 0 : index
        %c0_37 = arith.constant 0 : index
        %51 = vector.load %arg13[%c0_36, %c0_37] : memref<1x32xf32, #tpu.memory_space<vmem>>, vector<1x32xf32>
        tpu.vector_store %arg13[%c0_36, %c0_37], %50 {strides = array<i32>} : memref<1x32xf32, #tpu.memory_space<vmem>>, vector<1x32xf32>,
      } else {
      }
      %c0_7 = arith.constant 0 : index
      %c0_8 = arith.constant 0 : index
      %12 = vector.load %arg12[%c0_7, %c0_8] : memref<1x32xf32, #tpu.memory_space<vmem>>, vector<1x32xf32>
      %13 = vector.broadcast %12 : vector<1x32xf32> to vector<8x32xf32>
      %14 = arith.mulf %2, %13 : vector<8x32xf32>
      %c0_9 = arith.constant 0 : index
      %c0_10 = arith.constant 0 : index
      %15 = vector.load %arg13[%c0_9, %c0_10] : memref<1x32xf32, #tpu.memory_space<vmem>>, vector<1x32xf32>
      %16 = vector.broadcast %15 : vector<1x32xf32> to vector<8x32xf32>
      %17 = arith.addf %14, %16 : vector<8x32xf32>
      %cst_11 = arith.constant 0.000000e+00 : f32
      %18 = vector.broadcast %cst_11 : f32 to vector<8x32xf32>
      %19 = arith.cmpf ogt, %17, %18 : vector<8x32xf32>
      %cst_12 = arith.constant 0.00999999977 : f32
      %20 = vector.broadcast %cst_12 : f32 to vector<8x32xf32>
      %21 = arith.mulf %20, %17 : vector<8x32xf32>
      %22 = arith.select %19, %17, %21 : vector<8x32xi1>, vector<8x32xf32>
      %c0_13 = arith.constant 0 : index
      %c0_14 = arith.constant 0 : index
      %23 = vector.load %arg6[%c0_13, %c0_14] : memref<32x16xf32, #tpu.memory_space<vmem>>, vector<32x16xf32>
      %cst_15 = arith.constant dense<0.000000e+00> : vector<8x16xf32>
      %24 = tpu.matmul %22, %23, %cst_15 {dimension_numbers = #tpu.dot_dimension_numbers<[1], [0], [0], [1], [0, 0, 1, 1], [], []>} : vector<8x32xf32>, vector<32x16xf32>, vector<8x16xf32> -> vector<8x16xf32>
      %c0_16 = arith.constant 0 : index
      %c0_17 = arith.constant 0 : index
      %25 = vector.load %arg7[%c0_16, %c0_17] : memref<1x16xf32, #tpu.memory_space<vmem>>, vector<1x16xf32>
      %26 = vector.broadcast %25 : vector<1x16xf32> to vector<8x16xf32>
      %27 = arith.addf %24, %26 : vector<8x16xf32>
      %28 = vector.extract_strided_slice %27 {offsets = [0, 0], sizes = [8, 8], strides = [1, 1]} : vector<8x16xf32> to vector<8x8xf32>
      %c0_18 = arith.constant 0 : index
      %c0_19 = arith.constant 0 : index
      %29 = vector.load %arg8[%c0_18, %c0_19] : memref<8x8xf32, #tpu.memory_space<vmem>>, vector<8x8xf32>
      tpu.vector_store %arg8[%c0_18, %c0_19], %28 {strides = array<i32>} : memref<8x8xf32, #tpu.memory_space<vmem>>, vector<8x8xf32>,
      %30 = vector.extract_strided_slice %27 {offsets = [0, 8], sizes = [8, 8], strides = [1, 1]} : vector<8x16xf32> to vector<8x8xf32>
      %c0_20 = arith.constant 0 : index
      %c0_21 = arith.constant 0 : index
      %31 = vector.load %arg9[%c0_20, %c0_21] : memref<8x8xf32, #tpu.memory_space<vmem>>, vector<8x8xf32>
      tpu.vector_store %arg9[%c0_20, %c0_21], %30 {strides = array<i32>} : memref<8x8xf32, #tpu.memory_space<vmem>>, vector<8x8xf32>,
    } else {
    }
    return
  }
  func.func @transform_0(%arg0: i32, %arg1: i32) -> (i32, i32) {
    %c0_i32 = arith.constant 0 : i32
    %c0_i32_0 = arith.constant 0 : i32
    return %arg1, %c0_i32 : i32, i32
  }
  func.func @transform_1(%arg0: i32, %arg1: i32) -> (i32, i32) {
    %c0_i32 = arith.constant 0 : i32
    %c0_i32_0 = arith.constant 0 : i32
    %c0_i32_1 = arith.constant 0 : i32
    return %c0_i32, %c0_i32_0 : i32, i32
  }
  func.func @transform_2(%arg0: i32, %arg1: i32) -> (i32, i32) {
    %c0_i32 = arith.constant 0 : i32
    %c0_i32_0 = arith.constant 0 : i32
    %c0_i32_1 = arith.constant 0 : i32
    return %c0_i32, %c0_i32_0 : i32, i32
  }
  func.func @transform_3(%arg0: i32, %arg1: i32) -> (i32, i32) {
    %c0_i32 = arith.constant 0 : i32
    %c0_i32_0 = arith.constant 0 : i32
    %c0_i32_1 = arith.constant 0 : i32
    return %c0_i32, %c0_i32_0 : i32, i32
  }
  func.func @transform_4(%arg0: i32, %arg1: i32) -> (i32, i32) {
    %c0_i32 = arith.constant 0 : i32
    %c0_i32_0 = arith.constant 0 : i32
    %c0_i32_1 = arith.constant 0 : i32
    return %c0_i32, %c0_i32_0 : i32, i32
  }
  func.func @transform_5(%arg0: i32, %arg1: i32) -> (i32, i32) {
    %c0_i32 = arith.constant 0 : i32
    %c0_i32_0 = arith.constant 0 : i32
    %c0_i32_1 = arith.constant 0 : i32
    return %c0_i32, %c0_i32_0 : i32, i32
  }
  func.func @transform_6(%arg0: i32, %arg1: i32) -> (i32, i32) {
    %0 = arith.muli %arg1, %arg0 : i32
    %c0_i32 = arith.constant 0 : i32
    %c0_i32_0 = arith.constant 0 : i32
    return %0, %c0_i32 : i32, i32
  }
  func.func @transform_7(%arg0: i32, %arg1: i32) -> (i32, i32) {
    %0 = arith.muli %arg1, %arg0 : i32
    %c0_i32 = arith.constant 0 : i32
    %c0_i32_0 = arith.constant 0 : i32
    return %0, %c0_i32 : i32, i32
  }
}

</mosaic_0001>

<llo_original>
// kernel: tpu_custom_call.1
$region0: #{tpu_custom_call.1}
  #allocation0 [shape = 'u32[]', space=smem, size = 0x4, offset = 0x4, fixed_abs, tag = 'smem constant byte address 0x4 - core index']
  #allocation1 [shape = 'u32[144,128]{1,0:T(1,128)}', space=vmem, size = 0x12000, scoped, tag = 'internal scratch']
  #allocation2 [shape = 'f32[1,32]{1,0:T(1,128)}', space=vmem, size = 0x200, scoped, tag = 'scratch operand']
  #allocation3 [shape = 'f32[1,32]{1,0:T(1,128)}', space=vmem, size = 0x200, scoped, tag = 'scratch operand']
  #allocation4 [shape = 'f32[1,32]{1,0:T(1,128)}', space=vmem, size = 0x200, scoped, tag = 'scratch operand']
  #allocation5 [shape = 'f32[1,32]{1,0:T(1,128)}', space=vmem, size = 0x200, scoped, tag = 'scratch operand']
  %s0 = inlined_call_operand.vmem [shape: f32[8,16], index: 0, kind: input, shape index: {}]
  %s1 = inlined_call_operand.vmem [shape: f32[16,32], index: 1, kind: input, shape index: {}]
  %s2 = inlined_call_operand.vmem [shape: f32[1,32], index: 2, kind: input, shape index: {}]
  %s3 = inlined_call_operand.vmem [shape: f32[1,32], index: 3, kind: input, shape index: {}]
  %s4 = inlined_call_operand.vmem [shape: f32[32,16], index: 4, kind: input, shape index: {}]
  %s5 = inlined_call_operand.vmem [shape: f32[1,16], index: 5, kind: input, shape index: {}]
  %s6 = inlined_call_operand.hbm [shape: f32[8,8], index: 6, kind: output, shape index: {0}]
  %s7 = inlined_call_operand.hbm [shape: f32[8,8], index: 7, kind: output, shape index: {1}]
  %8 = xla_tuple %s6, %s7
  %s9 = sld [smem:[#allocation0]]
  $region81: #{tpu_custom_call.1} parent=0
    _
  %s11 = ssub.s32 1, %s9
  %s12 = scalar_select 0, %s11, %s9
  $region1: #{tpu_custom_call.1} parent=0
    #allocation6 [shape = 'u8[8192]{0}', space=vmem, size = 0x2000, scoped, tag = 'output window, operand 0']
    #allocation7 [shape = 's32[2]{0}', space=sflag, size = 0x8, scoped, tag = 'scoped memory for tpu_custom_call.1']
    #allocation8 [shape = 'u8[8192]{0}', space=vmem, size = 0x2000, scoped, tag = 'output window, operand 1']
    #allocation9 [shape = 's32[2]{0}', space=sflag, size = 0x8, scoped, tag = 'scoped memory for tpu_custom_call.1']
    %13 = vsyncpa [#allocation7], 0
    %s14 = scalar_lea.sflag [#allocation7], 1
    %15 = vsyncpa %s14, 0
    %16 = vsyncpa [#allocation9], 0
    %s17 = scalar_lea.sflag [#allocation9], 1
    %18 = vsyncpa %s17, 0
    loop: start=0, step=1, limit=4
    $region2: #{tpu_custom_call.1} parent=1 // loop_pre_header
      _
    $region3: #{tpu_custom_call.1} parent=1 // loop_header
      %s20 = sphi 0, %s24
      %p21 = scmp.ge.s32.totalorder %s20, 4
      %s27 = sphi 0, %s39
      %s28 = sphi 0, %s35
      %s29 = sphi 0, %s27
      %s30 = sphi 0, %s28
      %s31 = sphi 0, %s29
      %s32 = sphi 0, %s30
      %s42 = sphi 0, %s44
      %s45 = sphi 0, %s42
      %s46 = sphi 0, %s45
      %s62 = sphi 0, %s46
      %s66 = sphi 0, %s66
      %s68 = sphi 0, %s66
      %s69 = sphi 0, %s68
      %s83 = sphi 0, %s69
      %s87 = sphi 0, %s87
      %s89 = sphi 0, %s87
      %s90 = sphi 0, %s89
      %s104 = sphi 0, %s90
      %s108 = sphi 0, %s108
      %s110 = sphi 0, %s108
      %s111 = sphi 0, %s110
      %s125 = sphi 0, %s111
      %s129 = sphi 0, %s129
      %s131 = sphi 0, %s129
      %s132 = sphi 0, %s131
      %s146 = sphi 0, %s132
      %s150 = sphi 0, %s150
      %s152 = sphi 0, %s150
      %s153 = sphi 0, %s152
      %s167 = sphi 0, %s153
      %s175 = sphi 0, %s177
      %s178 = sphi 0, %s175
      %s179 = sphi 0, %s178
      %s195 = sphi 0, %s179
      %s203 = sphi 0, %s205
      %s206 = sphi 0, %s203
      %s207 = sphi 0, %s206
      %s223 = sphi 0, %s207
    $region4: #{tpu_custom_call.1} parent=1 // loop_header_branch
      %23 = sbr.rel (%p21) target = $region8
    $region5: #{tpu_custom_call.1} parent=1 // loop_body
      %s25 = ssub.s32 %s20, 1
      %s26 = ssub.s32 %s20, 2
      %s33 = sadd.s32 1, %s28
      %p34 = scmp.ge.s32.totalorder %s33, 1
      %s35 = scalar_select %p34, 0, %s33
      %s36 = sadd.s32 1, %s27
      %s37 = scalar_select %p34, %s36, %s27
      %p38 = scmp.ge.s32.totalorder %s37, 2
      %s39 = scalar_select %p38, 0, %s37
      %s40 = ssub.s32 %s28, %s35
      %p41 = scmp.eq.s32.totalorder %s40, 0
      %s43 = sadd.s32 %s42, 1
      %s44 = scalar_select %p41, %s42, %s43
      %p47 = pneg %p41
      %p48 = scmp.eq.s32.totalorder %s20, 1
      %p49 = por %p47, %p48
      %p50 = scmp.ne.s32.totalorder %s42, %s45
      %p51 = scmp.eq.s32.totalorder %s20, 0
      %p52 = por %p50, %p51
      %p53 = scmp.ne.s32.totalorder %s42, %s45
      %p54 = scmp.eq.s32.totalorder %s25, 1
      %p55 = por %p53, %p54
      %p56 = scmp.ne.s32.totalorder %s45, %s46
      %p57 = scmp.eq.s32.totalorder %s25, 0
      %p58 = por %p56, %p57
      %p59 = scmp.ne.s32.totalorder %s45, %s46
      %p60 = scmp.eq.s32.totalorder %s26, 1
      %p61 = por %p59, %p60
      %p63 = scmp.ne.s32.totalorder %s46, %s62
      %p64 = scmp.eq.s32.totalorder %s26, 0
      %p65 = por %p63, %p64
      %s67 = sadd.s32 %s66, 1
      %p70 = scmp.eq.s32.totalorder %s20, 1
      %p71 = scmp.ne.s32.totalorder %s66, %s68
      %p72 = scmp.eq.s32.totalorder %s20, 0
      %p73 = por %p71, %p72
      %p74 = scmp.ne.s32.totalorder %s66, %s68
      %p75 = scmp.eq.s32.totalorder %s25, 1
      %p76 = por %p74, %p75
      %p77 = scmp.ne.s32.totalorder %s68, %s69
      %p78 = scmp.eq.s32.totalorder %s25, 0
      %p79 = por %p77, %p78
      %p80 = scmp.ne.s32.totalorder %s68, %s69
      %p81 = scmp.eq.s32.totalorder %s26, 1
      %p82 = por %p80, %p81
      %p84 = scmp.ne.s32.totalorder %s69, %s83
      %p85 = scmp.eq.s32.totalorder %s26, 0
      %p86 = por %p84, %p85
      %s88 = sadd.s32 %s87, 1
      %p91 = scmp.eq.s32.totalorder %s20, 1
      %p92 = scmp.ne.s32.totalorder %s87, %s89
      %p93 = scmp.eq.s32.totalorder %s20, 0
      %p94 = por %p92, %p93
      %p95 = scmp.ne.s32.totalorder %s87, %s89
      %p96 = scmp.eq.s32.totalorder %s25, 1
      %p97 = por %p95, %p96
      %p98 = scmp.ne.s32.totalorder %s89, %s90
      %p99 = scmp.eq.s32.totalorder %s25, 0
      %p100 = por %p98, %p99
      %p101 = scmp.ne.s32.totalorder %s89, %s90
      %p102 = scmp.eq.s32.totalorder %s26, 1
      %p103 = por %p101, %p102
      %p105 = scmp.ne.s32.totalorder %s90, %s104
      %p106 = scmp.eq.s32.totalorder %s26, 0
      %p107 = por %p105, %p106
      %s109 = sadd.s32 %s108, 1
      %p112 = scmp.eq.s32.totalorder %s20, 1
      %p113 = scmp.ne.s32.totalorder %s108, %s110
      %p114 = scmp.eq.s32.totalorder %s20, 0
      %p115 = por %p113, %p114
      %p116 = scmp.ne.s32.totalorder %s108, %s110
      %p117 = scmp.eq.s32.totalorder %s25, 1
      %p118 = por %p116, %p117
      %p119 = scmp.ne.s32.totalorder %s110, %s111
      %p120 = scmp.eq.s32.totalorder %s25, 0
      %p121 = por %p119, %p120
      %p122 = scmp.ne.s32.totalorder %s110, %s111
      %p123 = scmp.eq.s32.totalorder %s26, 1
      %p124 = por %p122, %p123
      %p126 = scmp.ne.s32.totalorder %s111, %s125
      %p127 = scmp.eq.s32.totalorder %s26, 0
      %p128 = por %p126, %p127
      %s130 = sadd.s32 %s129, 1
      %p133 = scmp.eq.s32.totalorder %s20, 1
      %p134 = scmp.ne.s32.totalorder %s129, %s131
      %p135 = scmp.eq.s32.totalorder %s20, 0
      %p136 = por %p134, %p135
      %p137 = scmp.ne.s32.totalorder %s129, %s131
      %p138 = scmp.eq.s32.totalorder %s25, 1
      %p139 = por %p137, %p138
      %p140 = scmp.ne.s32.totalorder %s131, %s132
      %p141 = scmp.eq.s32.totalorder %s25, 0
      %p142 = por %p140, %p141
      %p143 = scmp.ne.s32.totalorder %s131, %s132
      %p144 = scmp.eq.s32.totalorder %s26, 1
      %p145 = por %p143, %p144
      %p147 = scmp.ne.s32.totalorder %s132, %s146
      %p148 = scmp.eq.s32.totalorder %s26, 0
      %p149 = por %p147, %p148
      %s151 = sadd.s32 %s150, 1
      %p154 = scmp.eq.s32.totalorder %s20, 1
      %p155 = scmp.ne.s32.totalorder %s150, %s152
      %p156 = scmp.eq.s32.totalorder %s20, 0
      %p157 = por %p155, %p156
      %p158 = scmp.ne.s32.totalorder %s150, %s152
      %p159 = scmp.eq.s32.totalorder %s25, 1
      %p160 = por %p158, %p159
      %p161 = scmp.ne.s32.totalorder %s152, %s153
      %p162 = scmp.eq.s32.totalorder %s25, 0
      %p163 = por %p161, %p162
      %p164 = scmp.ne.s32.totalorder %s152, %s153
      %p165 = scmp.eq.s32.totalorder %s26, 1
      %p166 = por %p164, %p165
      %p168 = scmp.ne.s32.totalorder %s153, %s167
      %p169 = scmp.eq.s32.totalorder %s26, 0
      %p170 = por %p168, %p169
      %s171 = smul.u32 %s28, %s27
      %s172 = smul.u32 %s35, %s39
      %s173 = ssub.s32 %s171, %s172
      %p174 = scmp.eq.s32.totalorder %s173, 0
      %s176 = sadd.s32 %s175, 1
      %s177 = scalar_select %p174, %s175, %s176
      %p180 = pneg %p174
      %p181 = scmp.eq.s32.totalorder %s20, 1
      %p182 = por %p180, %p181
      %p183 = scmp.ne.s32.totalorder %s175, %s178
      %p184 = scmp.eq.s32.totalorder %s20, 0
      %p185 = por %p183, %p184
      %p186 = scmp.ne.s32.totalorder %s175, %s178
      %p187 = scmp.eq.s32.totalorder %s25, 1
      %p188 = por %p186, %p187
      %p189 = scmp.ne.s32.totalorder %s178, %s179
      %p190 = scmp.eq.s32.totalorder %s25, 0
      %p191 = por %p189, %p190
      %p192 = scmp.ne.s32.totalorder %s178, %s179
      %p193 = scmp.eq.s32.totalorder %s26, 1
      %p194 = por %p192, %p193
      %p196 = scmp.ne.s32.totalorder %s179, %s195
      %p197 = scmp.eq.s32.totalorder %s26, 0
      %p198 = por %p196, %p197
      %s199 = smul.u32 %s28, %s27
      %s200 = smul.u32 %s35, %s39
      %s201 = ssub.s32 %s199, %s200
      %p202 = scmp.eq.s32.totalorder %s201, 0
      %s204 = sadd.s32 %s203, 1
      %s205 = scalar_select %p202, %s203, %s204
      %p208 = pneg %p202
      %p209 = scmp.eq.s32.totalorder %s20, 1
      %p210 = por %p208, %p209
      %p211 = scmp.ne.s32.totalorder %s203, %s206
      %p212 = scmp.eq.s32.totalorder %s20, 0
      %p213 = por %p211, %p212
      %p214 = scmp.ne.s32.totalorder %s203, %s206
      %p215 = scmp.eq.s32.totalorder %s25, 1
      %p216 = por %p214, %p215
      %p217 = scmp.ne.s32.totalorder %s206, %s207
      %p218 = scmp.eq.s32.totalorder %s25, 0
      %p219 = por %p217, %p218
      %p220 = scmp.ne.s32.totalorder %s206, %s207
      %p221 = scmp.eq.s32.totalorder %s26, 1
      %p222 = por %p220, %p221
      %p224 = scmp.ne.s32.totalorder %s207, %s223
      %p225 = scmp.eq.s32.totalorder %s26, 0
      %p226 = por %p224, %p225
      %p227 = scmp.le.s32.totalorder 1, %s20
      %p228 = scmp.lt.s32.totalorder %s20, 3
      %p229 = pnand %p227, %p228
      %p230 = pneg %p229
      // Predicated region
      $region9: #{tpu_custom_call.1} parent=5 // pred_check
        _
      $region10: #{tpu_custom_call.1} parent=5 // pred_check_branch
        %232 = sbr.rel (%p229) target = $region12
      $region11: #{tpu_custom_call.1} parent=5 // pred_region
        %s233 = ssub.s32 %s20, 1
        // Predicated region
        $region13: #{tpu_custom_call.1} parent=11 // pred_check
          %p234 = pneg %p58
        $region14: #{tpu_custom_call.1} parent=11 // pred_check_branch
          %236 = sbr.rel (%p234) target = $region16
        $region15: #{tpu_custom_call.1} parent=11 // pred_region
          %p237 = scmp.lt.s32.totalorder %s30, 0
          %s238 = scalar_select %p237, %s30, 0
          %s239 = smul.addr %s238, 8
          %s240 = scalar_lea.vmem %s0, %s239
        $region16: #{tpu_custom_call.1} parent=11 // pred_fallthru
          _
        // Predicated region
        $region17: #{tpu_custom_call.1} parent=11 // pred_check
          %p241 = pneg %p79
        $region18: #{tpu_custom_call.1} parent=11 // pred_check_branch
          %243 = sbr.rel (%p241) target = $region20
        $region19: #{tpu_custom_call.1} parent=11 // pred_region
          _
        $region20: #{tpu_custom_call.1} parent=11 // pred_fallthru
          _
        // Predicated region
        $region21: #{tpu_custom_call.1} parent=11 // pred_check
          %p244 = pneg %p100
        $region22: #{tpu_custom_call.1} parent=11 // pred_check_branch
          %246 = sbr.rel (%p244) target = $region24
        $region23: #{tpu_custom_call.1} parent=11 // pred_region
          _
        $region24: #{tpu_custom_call.1} parent=11 // pred_fallthru
          _
        // Predicated region
        $region25: #{tpu_custom_call.1} parent=11 // pred_check
          %p247 = pneg %p121
        $region26: #{tpu_custom_call.1} parent=11 // pred_check_branch
          %249 = sbr.rel (%p247) target = $region28
        $region27: #{tpu_custom_call.1} parent=11 // pred_region
          _
        $region28: #{tpu_custom_call.1} parent=11 // pred_fallthru
          _
        // Predicated region
        $region29: #{tpu_custom_call.1} parent=11 // pred_check
          %p250 = pneg %p142
        $region30: #{tpu_custom_call.1} parent=11 // pred_check_branch
          %252 = sbr.rel (%p250) target = $region32
        $region31: #{tpu_custom_call.1} parent=11 // pred_region
          _
        $region32: #{tpu_custom_call.1} parent=11 // pred_fallthru
          _
        // Predicated region
        $region33: #{tpu_custom_call.1} parent=11 // pred_check
          %p253 = pneg %p163
        $region34: #{tpu_custom_call.1} parent=11 // pred_check_branch
          %255 = sbr.rel (%p253) target = $region36
        $region35: #{tpu_custom_call.1} parent=11 // pred_region
          _
        $region36: #{tpu_custom_call.1} parent=11 // pred_fallthru
          _
      $region12: #{tpu_custom_call.1} parent=5 // pred_fallthru
        _
      %p256 = scmp.lt.s32.totalorder %s20, 2
      // Predicated region
      $region37: #{tpu_custom_call.1} parent=5 // pred_check
        %p257 = pneg %p256
      $region38: #{tpu_custom_call.1} parent=5 // pred_check_branch
        %259 = sbr.rel (%p257) target = $region40
      $region39: #{tpu_custom_call.1} parent=5 // pred_region
        _
      $region40: #{tpu_custom_call.1} parent=5 // pred_fallthru
        _
      %p260 = scmp.le.s32.totalorder 1, %s20
      %p261 = scmp.lt.s32.totalorder %s20, 3
      %p262 = pnand %p260, %p261
      %p263 = pneg %p262
      // Predicated region
      $region41: #{tpu_custom_call.1} parent=5 // pred_check
        _
      $region42: #{tpu_custom_call.1} parent=5 // pred_check_branch
        %265 = sbr.rel (%p262) target = $region44
      $region43: #{tpu_custom_call.1} parent=5 // pred_region
        %s266 = ssub.s32 %s20, 1
        %p267 = scmp.lt.s32.totalorder %s30, 0
        %s268 = scalar_select %p267, %s30, 0
        %s269 = smul.addr %s268, 8
        %s270 = scalar_lea.vmem %s0, %s269
        %p271 = pneg %p58
        %p272 = pneg %p55
        %p273 = pneg %p79
        %p274 = pneg %p76
        %p275 = pneg %p100
        %p276 = pneg %p97
        %p277 = pneg %p121
        %p278 = pneg %p118
        %p279 = pneg %p142
        %p280 = pneg %p139
        %p281 = pneg %p163
        %p282 = pneg %p160
        %p283 = pneg %p191
        %p284 = pneg %p188
        %s285 = sand.u32 %s178, 1
        %s286 = scalar_lea.sflag [#allocation7], %s285
        %s287 = sand.u32 %s178, 1
        %s288 = smul.addr %s287, 8
        %s289 = scalar_lea.vmem [#allocation6], %s288
        %p290 = pneg %p219
        %p291 = pneg %p216
        %s292 = sand.u32 %s206, 1
        %s293 = scalar_lea.sflag [#allocation9], %s292
        %s294 = sand.u32 %s206, 1
        %s295 = smul.addr %s294, 8
        %s296 = scalar_lea.vmem [#allocation8], %s295
        %p297 = scmp.lt.s32.totalorder %s30, 0
        %s298 = scalar_select %p297, %s30, 0
        %s299 = smul.addr %s298, 8
        %s300 = scalar_lea.vmem %s0, %s299
        %s301 = smul.u32 %s30, %s29
        %s302 = smul.u32 %s30, %s29
        %v303 = vld [vmem:[%s300] sm:$0xff]
        %v304 = vld [vmem:[%s1] sm:$0xff]
        %v305 = vld [vmem:[%s1 + $0x8] sm:$0xff]
        %vm306 = vcmask 130048
        %v308 = vsel %vm306, %v303, 0
        %310 = vmatprep.subr.mxu0 0.0
        %311 = vmatpush1.msra.mxu0 %v304
        %312 = vmatprep.subr.mxu0 0.0
        %313 = vmatpush1.msra.mxu0 %v305
        %314 = vmatprep.subr.mxu0 0.0
        %315 = vmatpush1.msra.mxu0 0.0
        %316 = vmatprep.subr.mxu0 0.0
        %317 = vmatpush1.msra.mxu0 0.0
        %318 = vmatprep.subr.mxu0 0.0
        %319 = vmatpush1.msra.mxu0 0.0
        %320 = vmatprep.subr.mxu0 0.0
        %321 = vmatpush1.msra.mxu0 0.0
        %322 = vmatprep.subr.mxu0 0.0
        %323 = vmatpush1.msra.mxu0 0.0
        %324 = vmatprep.subr.mxu0 0.0
        %325 = vmatpush1.msra.mxu0 0.0
        %326 = vmatprep.subr.mxu0 0.0
        %327 = vmatpush1.msra.mxu0 0.0
        %328 = vmatprep.subr.mxu0 0.0
        %329 = vmatpush1.msra.mxu0 0.0
        %330 = vmatprep.subr.mxu0 0.0
        %331 = vmatpush1.msra.mxu0 0.0
        %332 = vmatprep.subr.mxu0 0.0
        %333 = vmatpush1.msra.mxu0 0.0
        %334 = vmatprep.subr.mxu0 0.0
        %335 = vmatpush1.msra.mxu0 0.0
        %336 = vmatprep.subr.mxu0 0.0
        %337 = vmatpush1.msra.mxu0 0.0
        %338 = vmatprep.subr.mxu0 0.0
        %339 = vmatpush1.msra.mxu0 0.0
        %340 = vmatprep.subr.mxu0 0.0
        %341 = vmatpush1.msra.mxu0 0.0
        %342 = vmatprep.subr.mxu0 0.0
        %343 = vmatpush1.msra.mxu0 0.0
        %344 = vmatprep.subr.mxu0 0.0
        %345 = vmatpush1.msra.mxu0 0.0
        %346 = vmatprep.subr.mxu0 0.0
        %347 = vmatpush1.msra.mxu0 0.0
        %348 = vmatprep.subr.mxu0 0.0
        %349 = vmatpush1.msra.mxu0 0.0
        %350 = vmatprep.subr.mxu0 0.0
        %351 = vmatpush1.msra.mxu0 0.0
        %352 = vmatprep.subr.mxu0 0.0
        %353 = vmatpush1.msra.mxu0 0.0
        %354 = vmatprep.subr.mxu0 0.0
        %355 = vmatpush1.msra.mxu0 0.0
        %356 = vmatprep.subr.mxu0 0.0
        %357 = vmatpush1.msra.mxu0 0.0
        %358 = vmatprep.subr.mxu0 0.0
        %359 = vmatpush1.msra.mxu0 0.0
        %360 = vmatprep.subr.mxu0 0.0
        %361 = vmatpush1.msra.mxu0 0.0
        %362 = vmatprep.subr.mxu0 0.0
        %363 = vmatpush1.msra.mxu0 0.0
        %364 = vmatprep.subr.mxu0 0.0
        %365 = vmatpush1.msra.mxu0 0.0
        %366 = vmatprep.subr.mxu0 0.0
        %367 = vmatpush1.msra.mxu0 0.0
        %368 = vmatprep.subr.mxu0 0.0
        %369 = vmatpush1.msra.mxu0 0.0
        %370 = vmatprep.subr.mxu0 0.0
        %371 = vmatpush1.msra.mxu0 0.0
        %372 = vmatprep.subr.mxu0 0.0
        %373 = vmatpush1.msra.mxu0 0.0
        %374 = vmatprep.mubr.f32.mxu0 0.0
        %375 = vmatmul.mubr.f32.gmra.mrb[0].mxu0 %v308
        %v376 = vpop.f32.mrb[0].mxu0
        %v377 = vadd.f32 0.0, %v376
        %v378 = vpop.f32.mrb[0].mxu0
        %379 = vdwg.mxu0
        %p380 = scmp.eq.s32.totalorder %s29, 0
        // Predicated region
        $region45: #{tpu_custom_call.1} parent=43 // pred_check
          %p381 = pneg %p380
        $region46: #{tpu_custom_call.1} parent=43 // pred_check_branch
          %383 = sbr.rel (%p381) target = $region48
        $region47: #{tpu_custom_call.1} parent=43 // pred_region
          %p384 = scmp.eq.s32.totalorder %s30, 0
          // Predicated region
          $region49: #{tpu_custom_call.1} parent=47 // pred_check
            %p385 = pneg %p384
          $region50: #{tpu_custom_call.1} parent=47 // pred_check_branch
            %387 = sbr.rel (%p385) target = $region52
          $region51: #{tpu_custom_call.1} parent=47 // pred_region
            %vm388 = vcmask 253952
            %389 = vst.msk [vmem:[#allocation2] sm:$0x1] %vm388, 0.0
            %390 = vst.msk [vmem:[#allocation3] sm:$0x1] %vm388, 0.0
          $region52: #{tpu_custom_call.1} parent=47 // pred_fallthru
            _
          %v391 = vld [vmem:[#allocation2] sm:$0x1]
          %vm392 = vcmask 261120
          %v393 = vsel %vm392, %v377, 0.0
          %v394 = vrot.slane %v393, 4
          %v395 = vadd.f32 %v393, %v394
          %v396 = vrot.slane %v395, 2
          %v397 = vadd.f32 %v395, %v396
          %v398 = vrot.slane %v397, 1
          %v399 = vadd.f32 %v397, %v398
          %v400 = vadd.f32 %v391, %v399
          %vm401 = vcmask 253952
          %402 = vst.msk [vmem:[#allocation2] sm:$0x1] %vm401, %v400
          %v403 = vld [vmem:[#allocation3] sm:$0x1]
          %v404 = vmul.f32 %v377, %v377
          %v405 = vsel %vm392, %v404, 0.0
          %v406 = vrot.slane %v405, 4
          %v407 = vadd.f32 %v405, %v406
          %v408 = vrot.slane %v407, 2
          %v409 = vadd.f32 %v407, %v408
          %v410 = vrot.slane %v409, 1
          %v411 = vadd.f32 %v409, %v410
          %v412 = vadd.f32 %v403, %v411
          %413 = vst.msk [vmem:[#allocation3] sm:$0x1] %vm401, %v412
        $region48: #{tpu_custom_call.1} parent=43 // pred_fallthru
          _
        %p414 = scmp.eq.s32.totalorder %s29, 1
        // Predicated region
        $region53: #{tpu_custom_call.1} parent=43 // pred_check
          %p415 = pneg %p414
        $region54: #{tpu_custom_call.1} parent=43 // pred_check_branch
          %417 = sbr.rel (%p415) target = $region56
        $region55: #{tpu_custom_call.1} parent=43 // pred_region
          %p418 = scmp.eq.s32.totalorder %s30, 0
          // Predicated region
          $region57: #{tpu_custom_call.1} parent=55 // pred_check
            %p419 = pneg %p418
          $region58: #{tpu_custom_call.1} parent=55 // pred_check_branch
            %421 = sbr.rel (%p419) target = $region60
          $region59: #{tpu_custom_call.1} parent=55 // pred_region
            %v422 = vld [vmem:[#allocation2] sm:$0x1]
            %v423 = vmul.f32 %v422, 0.125
            %v424 = vld [vmem:[#allocation3] sm:$0x1]
            %v425 = vmul.f32 %v424, 0.125
            %v426 = vmul.f32 %v423, %v423
            %v427 = vsub.f32 %v425, %v426
            %v428 = vmax.f32 %v427, 0.0
            %v429 = vld [vmem:[%s2] sm:$0x1]
            %v430 = vadd.f32 %v428, 1e-05
            %v431 = vrsqrt.pop %v430
            %v432 = vmul.f32 %v429, %v431
            %vm433 = vcmask 253952
            %434 = vst.msk [vmem:[#allocation4] sm:$0x1] %vm433, %v432
            %v435 = vld [vmem:[%s3] sm:$0x1]
            %v436 = vmul.f32 %v423, %v432
            %v437 = vsub.f32 %v435, %v436
            %438 = vst.msk [vmem:[#allocation5] sm:$0x1] %vm433, %v437
          $region60: #{tpu_custom_call.1} parent=55 // pred_fallthru
            _
          %v439 = vld [vmem:[#allocation4] sm:$0x1]
          %v441 = vlaneseq
          %v442 = vshrl.u32 %v441, 7
          %v443 = vsub.s32 0, %v442
          %v444 = vrot.slane %v439, %v443
          %v446 = vmul.f32 %v377, %v444
          %v447 = vld [vmem:[#allocation5] sm:$0x1]
          %v449 = vlaneseq
          %v450 = vshrl.u32 %v449, 7
          %v451 = vsub.s32 0, %v450
          %v452 = vrot.slane %v447, %v451
          %v454 = vadd.f32 %v446, %v452
          %vm455 = vcmp.gt.f32.partialorder %v454, 0.0
          %v456 = vmul.f32 %v454, 0.01
          %v457 = vsel %vm455, %v454, %v456
          %v458 = vld [vmem:[%s4] sm:$0xff]
          %v459 = vld [vmem:[%s4 + $0x8] sm:$0xff]
          %v460 = vld [vmem:[%s4 + $0x10] sm:$0xff]
          %v461 = vld [vmem:[%s4 + $0x18] sm:$0xff]
          %v462 = vld [vmem:[%s5] sm:$0x1]
          %v464 = vlaneseq
          %v465 = vshrl.u32 %v464, 7
          %v466 = vsub.s32 0, %v465
          %v467 = vrot.slane %v462, %v466
          %vm469 = vcmask 261120
          %v471 = vsel %vm469, %v457, 0
          %473 = vmatprep.subr.mxu0 0.0
          %474 = vmatpush1.msra.mxu0 %v458
          %475 = vmatprep.subr.mxu0 0.0
          %476 = vmatpush1.msra.mxu0 %v459
          %477 = vmatprep.subr.mxu0 0.0
          %478 = vmatpush1.msra.mxu0 %v460
          %479 = vmatprep.subr.mxu0 0.0
          %480 = vmatpush1.msra.mxu0 %v461
          %481 = vmatprep.subr.mxu0 0.0
          %482 = vmatpush1.msra.mxu0 0.0
          %483 = vmatprep.subr.mxu0 0.0
          %484 = vmatpush1.msra.mxu0 0.0
          %485 = vmatprep.subr.mxu0 0.0
          %486 = vmatpush1.msra.mxu0 0.0
          %487 = vmatprep.subr.mxu0 0.0
          %488 = vmatpush1.msra.mxu0 0.0
          %489 = vmatprep.subr.mxu0 0.0
          %490 = vmatpush1.msra.mxu0 0.0
          %491 = vmatprep.subr.mxu0 0.0
          %492 = vmatpush1.msra.mxu0 0.0
          %493 = vmatprep.subr.mxu0 0.0
          %494 = vmatpush1.msra.mxu0 0.0
          %495 = vmatprep.subr.mxu0 0.0
          %496 = vmatpush1.msra.mxu0 0.0
          %497 = vmatprep.subr.mxu0 0.0
          %498 = vmatpush1.msra.mxu0 0.0
          %499 = vmatprep.subr.mxu0 0.0
          %500 = vmatpush1.msra.mxu0 0.0
          %501 = vmatprep.subr.mxu0 0.0
          %502 = vmatpush1.msra.mxu0 0.0
          %503 = vmatprep.subr.mxu0 0.0
          %504 = vmatpush1.msra.mxu0 0.0
          %505 = vmatprep.subr.mxu0 0.0
          %506 = vmatpush1.msra.mxu0 0.0
          %507 = vmatprep.subr.mxu0 0.0
          %508 = vmatpush1.msra.mxu0 0.0
          %509 = vmatprep.subr.mxu0 0.0
          %510 = vmatpush1.msra.mxu0 0.0
          %511 = vmatprep.subr.mxu0 0.0
          %512 = vmatpush1.msra.mxu0 0.0
          %513 = vmatprep.subr.mxu0 0.0
          %514 = vmatpush1.msra.mxu0 0.0
          %515 = vmatprep.subr.mxu0 0.0
          %516 = vmatpush1.msra.mxu0 0.0
          %517 = vmatprep.subr.mxu0 0.0
          %518 = vmatpush1.msra.mxu0 0.0
          %519 = vmatprep.subr.mxu0 0.0
          %520 = vmatpush1.msra.mxu0 0.0
          %521 = vmatprep.subr.mxu0 0.0
          %522 = vmatpush1.msra.mxu0 0.0
          %523 = vmatprep.subr.mxu0 0.0
          %524 = vmatpush1.msra.mxu0 0.0
          %525 = vmatprep.subr.mxu0 0.0
          %526 = vmatpush1.msra.mxu0 0.0
          %527 = vmatprep.subr.mxu0 0.0
          %528 = vmatpush1.msra.mxu0 0.0
          %529 = vmatprep.subr.mxu0 0.0
          %530 = vmatpush1.msra.mxu0 0.0
          %531 = vmatprep.subr.mxu0 0.0
          %532 = vmatpush1.msra.mxu0 0.0
          %533 = vmatprep.subr.mxu0 0.0
          %534 = vmatpush1.msra.mxu0 0.0
          %535 = vmatprep.subr.mxu0 0.0
          %536 = vmatpush1.msra.mxu0 0.0
          %537 = vmatprep.mubr.f32.mxu0 0.0
          %538 = vmatmul.mubr.f32.gmra.mrb[0].mxu0 %v471
          %v539 = vpop.f32.mrb[0].mxu0
          %v540 = vadd.f32 %v467, %v539
          %v541 = vpop.f32.mrb[0].mxu0
          %542 = vdwg.mxu0
          %vm543 = vcmask 64512
          %544 = vst.msk [vmem:[%s289] sm:$0xff] %vm543, %v540
          %546 = vrot.lane.b32.xlu0 %v540, 120
          %v547 = vpop.permute.xlu0 %546
          %549 = vst.msk [vmem:[%s296] sm:$0xff] %vm543, %v547
        $region56: #{tpu_custom_call.1} parent=43 // pred_fallthru
          _
        %s550 = sand.u32 %s178, 1
        %s551 = scalar_lea.sflag [#allocation7], %s550
        %s552 = sand.u32 %s178, 1
        %s553 = smul.addr %s552, 8
        %s554 = scalar_lea.vmem [#allocation6], %s553
        %s555 = sand.u32 %s206, 1
        %s556 = scalar_lea.sflag [#allocation9], %s555
        %s557 = sand.u32 %s206, 1
        %s558 = smul.addr %s557, 8
        %s559 = scalar_lea.vmem [#allocation8], %s558
        // Predicated region
        $region61: #{tpu_custom_call.1} parent=43 // pred_check
          %p560 = pneg %p188
        $region62: #{tpu_custom_call.1} parent=43 // pred_check_branch
          %562 = sbr.rel (%p560) target = $region64
        $region63: #{tpu_custom_call.1} parent=43 // pred_region
          %s563 = smul.u32 %s30, %s29
          %s565 = ssub.s32 128, 128
          %566 = vsyncadd %s551, %s565
          %s567 = smul.addr %s563, 128
          %s568 = scalar_lea.hbm %s6, %s567
          %s570 = sshll.u32 %s554, 4
          %s571 = int_to_ptr.vmem [resolvable:$true] %s570
          %573 = dma.vmem_to_hbm [thread:$0]  %s571, 128, %s568, %s551
        $region64: #{tpu_custom_call.1} parent=43 // pred_fallthru
          _
        // Predicated region
        $region65: #{tpu_custom_call.1} parent=43 // pred_check
          %p574 = pneg %p216
        $region66: #{tpu_custom_call.1} parent=43 // pred_check_branch
          %576 = sbr.rel (%p574) target = $region68
        $region67: #{tpu_custom_call.1} parent=43 // pred_region
          %s577 = smul.u32 %s30, %s29
          %s579 = ssub.s32 128, 128
          %580 = vsyncadd %s556, %s579
          %s581 = smul.addr %s577, 128
          %s582 = scalar_lea.hbm %s7, %s581
          %s584 = sshll.u32 %s559, 4
          %s585 = int_to_ptr.vmem [resolvable:$true] %s584
          %587 = dma.vmem_to_hbm [thread:$0]  %s585, 128, %s582, %s556
        $region68: #{tpu_custom_call.1} parent=43 // pred_fallthru
          _
      $region44: #{tpu_custom_call.1} parent=5 // pred_fallthru
        _
      %p588 = scmp.le.s32.totalorder 2, %s20
      // Predicated region
      $region69: #{tpu_custom_call.1} parent=5 // pred_check
        %p589 = pneg %p588
      $region70: #{tpu_custom_call.1} parent=5 // pred_check_branch
        %591 = sbr.rel (%p589) target = $region72
      $region71: #{tpu_custom_call.1} parent=5 // pred_region
        %s592 = ssub.s32 %s20, 2
        // Predicated region
        $region73: #{tpu_custom_call.1} parent=71 // pred_check
          %p593 = pneg %p194
        $region74: #{tpu_custom_call.1} parent=71 // pred_check_branch
          %595 = sbr.rel (%p593) target = $region76
        $region75: #{tpu_custom_call.1} parent=71 // pred_region
          %s596 = sand.u32 %s179, 1
          %s597 = scalar_lea.sflag [#allocation7], %s596
          %s598 = sand.u32 %s179, 1
          %s599 = smul.addr %s598, 8
          %s600 = scalar_lea.vmem [#allocation6], %s599
          %601 = dma.done %s597, 128
        $region76: #{tpu_custom_call.1} parent=71 // pred_fallthru
          _
        // Predicated region
        $region77: #{tpu_custom_call.1} parent=71 // pred_check
          %p602 = pneg %p222
        $region78: #{tpu_custom_call.1} parent=71 // pred_check_branch
          %604 = sbr.rel (%p602) target = $region80
        $region79: #{tpu_custom_call.1} parent=71 // pred_region
          %s605 = sand.u32 %s207, 1
          %s606 = scalar_lea.sflag [#allocation9], %s605
          %s607 = sand.u32 %s207, 1
          %s608 = smul.addr %s607, 8
          %s609 = scalar_lea.vmem [#allocation8], %s608
          %610 = dma.done %s606, 128
        $region80: #{tpu_custom_call.1} parent=71 // pred_fallthru
          _
      $region72: #{tpu_custom_call.1} parent=5 // pred_fallthru
        _
    $region6: #{tpu_custom_call.1} parent=1 // loop_footer
      %s24 = sadd.s32 1, %s20
    $region7: #{tpu_custom_call.1} parent=1 // loop_footer_branch
      %19 = sbr.rel target = $region3
    $region8: #{tpu_custom_call.1} parent=1 // loop_exit
      _
    %611 = vsyncpa [#allocation7], 1
    %s612 = scalar_lea.sflag [#allocation7], 1
    %613 = vsyncpa %s612, 1
    %614 = vsyncpa [#allocation9], 1
    %s615 = scalar_lea.sflag [#allocation9], 1
    %616 = vsyncpa %s615, 1

</llo_original>
